<compile_context>
chip_gen: v7x
topology: tpu7x:2x2x1
jax: 0.10.0
libtpu: 0.0.40
codegen_flags: <defaults>
</compile_context>

<pallas_src>
import functools

import jax
import jax.numpy as jnp
from jax import lax
from jax.experimental import pallas as pl
from jax.experimental.pallas import tpu as pltpu

HIDDEN = 768      # fc input dim is hard-coded to 768 in the module
OUT_DIM = 128     # default output_dim
_EPS = 1e-12      # torch F.normalize default eps


def _backbone_head_kernel(first_ref, last_ref, w_ref, b_ref, o_ref, acc_ref,
                          *, seq_len, seq_tile, mask_seq_tail):
    """Grid = (batch_tile [parallel], seq_tile [arbitrary/reduction]).

    acc_ref: [b_tile, H] f32 scratch accumulating sum over seq of (first+last).
    """
    si = pl.program_id(1)

    @pl.when(si == 0)
    def _init():
        acc_ref[...] = jnp.zeros_like(acc_ref)

    # Fused pool: one sum of (first + last) per tile, accumulated in f32.
    x = first_ref[...].astype(jnp.float32) + last_ref[...].astype(jnp.float32)
    if mask_seq_tail:  # static: only emitted when S % seq_tile != 0
        pos = si * seq_tile + lax.broadcasted_iota(jnp.int32, (1, seq_tile, 1), 1)
        x = jnp.where(pos < seq_len, x, 0.0)
    acc_ref[...] += jnp.sum(x, axis=1)

    @pl.when(si == pl.num_programs(1) - 1)
    def _finalize():
        # (first_avg + last_avg) / 2  ==  sum(first + last) / (2 * S)
        pooled = acc_ref[...] * (1.0 / (2.0 * seq_len))              # [b_tile, H]
        logits = jnp.dot(pooled, w_ref[...],
                         preferred_element_type=jnp.float32) + b_ref[...]
        # F.normalize(p=2, dim=-1): x / max(||x||_2, eps)  (torch-exact clamp)
        sq = jnp.sum(logits * logits, axis=-1, keepdims=True)
        norm = jnp.maximum(jnp.sqrt(sq), _EPS)
        o_ref[...] = (logits / norm).astype(o_ref.dtype)


def text_backbone_head(first_hidden, last_hidden, w, b, *, b_tile=None, s_tile=None):
    """first_hidden/last_hidden: [B,S,H] (f32 or bf16); w: [H,D]; b: [D] -> [B,D] f32."""
    B, S, H = first_hidden.shape
    assert last_hidden.shape == (B, S, H)
    assert w.shape[0] == H
    D = w.shape[1]

    # --- tile selection: keep 2 inputs x 2 pipeline buffers small enough for every
    # generation (incl. v7x's 64 MiB VMEM) while still streaming MBs per step.
    if s_tile is None:
        s_tile = S if S <= 128 else 128
    if s_tile != S:
        s_tile = max(8, (s_tile // 8) * 8)        # (8,128) sublane rule on seq axis
    if b_tile is None:
        b_tile = B if B <= 8 else 8
    if b_tile != B:
        b_tile = max(8, (b_tile // 8) * 8)        # output block sublane rule

    grid = (pl.cdiv(B, b_tile), pl.cdiv(S, s_tile))
    mask_seq_tail = (S % s_tile) != 0
    # Note: a partial *batch* tile only produces garbage in rows that are never
    # written back (output writes past B are discarded), so no batch mask needed.

    w = w.astype(jnp.float32)
    b2 = b.reshape(1, D).astype(jnp.float32)

    itemsize = jnp.dtype(first_hidden.dtype).itemsize
    need = (2 * 2 * b_tile * s_tile * H * itemsize      # 2 inputs, double-buffered
            + 2 * H * D * 4 + 2 * D * 4                 # weight + bias buffers
            + 2 * b_tile * D * 4                        # output buffers
            + b_tile * H * 4)                           # f32 accumulator
    vmem_limit = int(min(max(2 * need, 16 << 20), 48 << 20))

    kernel = functools.partial(_backbone_head_kernel, seq_len=S, seq_tile=s_tile,
                               mask_seq_tail=mask_seq_tail)

    return pl.pallas_call(
        kernel,
        out_shape=jax.ShapeDtypeStruct((B, D), jnp.float32),
        grid_spec=pltpu.PrefetchScalarGridSpec(
            num_scalar_prefetch=0,
            grid=grid,
            in_specs=[
                pl.BlockSpec((b_tile, s_tile, H), lambda bi, si: (bi, si, 0)),
                pl.BlockSpec((b_tile, s_tile, H), lambda bi, si: (bi, si, 0)),
                pl.BlockSpec((H, D), lambda bi, si: (0, 0)),   # resident weight
                pl.BlockSpec((1, D), lambda bi, si: (0, 0)),   # resident bias
            ],
            out_specs=pl.BlockSpec((b_tile, D), lambda bi, si: (bi, 0)),
            scratch_shapes=[pltpu.VMEM((b_tile, H), jnp.float32)],
        ),
        compiler_params=pltpu.CompilerParams(
            dimension_semantics=("parallel", "arbitrary"),
            vmem_limit_bytes=vmem_limit,
        ),
    )(first_hidden, last_hidden, w, b2)


def _reference(first_hidden, last_hidden, w, b):
    first = first_hidden.astype(jnp.float32)
    last = last_hidden.astype(jnp.float32)
    first_avg = jnp.mean(first, axis=1)
    last_avg = jnp.mean(last, axis=1)
    pooled = (first_avg + last_avg) * 0.5
    logits = pooled @ w.astype(jnp.float32) + b.astype(jnp.float32)
    norm = jnp.maximum(jnp.linalg.norm(logits, axis=-1, keepdims=True), _EPS)
    return logits / norm


if __name__ == "__main__":
    # TODO(synk): the pretrained HF RoBERTa extractor itself is not translated;
    # its hidden_states[1] / hidden_states[-1] outputs are synthesized as inputs.
    key = jax.random.PRNGKey(0)
    k1, k2, k3, k4, k5, k6 = jax.random.split(key, 6)

    B, S = 2, 8
    first_hidden = jax.random.normal(k1, (B, S, HIDDEN), dtype=jnp.float32)
    last_hidden = jax.random.normal(k2, (B, S, HIDDEN), dtype=jnp.float32)

    # fc params (Linear(768, 128)); stored as [H, D] so the kernel computes
    # x @ W (equivalent to torch's x @ weight.T).
    w = jax.random.normal(k3, (HIDDEN, OUT_DIM), dtype=jnp.float32) * 0.02
    b = jax.random.normal(k4, (OUT_DIM,), dtype=jnp.float32) * 0.02

    # --- f32 path (single-tile grid at this toy shape) ---
    out = jax.block_until_ready(text_backbone_head(first_hidden, last_hidden, w, b))
    ref = _reference(first_hidden, last_hidden, w, b)
    assert out.shape == (B, OUT_DIM)
    assert jnp.allclose(out, ref, atol=1e-5, rtol=1e-5)

    # --- bf16 activations + multi-step seq reduction with a ragged tail ---
    B2, S2 = 4, 24
    f2 = jax.random.normal(k5, (B2, S2, HIDDEN), dtype=jnp.float32).astype(jnp.bfloat16)
    l2 = jax.random.normal(k6, (B2, S2, HIDDEN), dtype=jnp.float32).astype(jnp.bfloat16)
    out2 = jax.block_until_ready(
        text_backbone_head(f2, l2, w, b, b_tile=B2, s_tile=16))
    ref2 = _reference(f2, l2, w, b)
    assert out2.shape == (B2, OUT_DIM)
    assert jnp.allclose(out2, ref2, atol=1e-4, rtol=1e-4)

    print("KERNEL_OK")
</pallas_src>

<mosaic_0001>
module attributes {stable_mosaic.version = 11 : i64} {
  func.func @_backbone_head_kernel(%arg0: i32, %arg1: i32, %arg2: memref<2x8x768xf32, #tpu.memory_space<vmem>>, %arg3: memref<2x8x768xf32, #tpu.memory_space<vmem>>, %arg4: memref<768x128xf32, #tpu.memory_space<vmem>>, %arg5: memref<1x128xf32, #tpu.memory_space<vmem>>, %arg6: memref<2x128xf32, #tpu.memory_space<vmem>>, %arg7: memref<2x768xf32, #tpu.memory_space<vmem>>) attributes {dimension_semantics = [#tpu.dimension_semantics<parallel>, #tpu.dimension_semantics<arbitrary>], iteration_bounds = array<i64: 1, 1>, scalar_prefetch = 0 : i64, scratch_operands = 1 : i64, tpu.core_type = #tpu.core_type<tc>, window_params = [{transform_indices = @transform_0, window_bounds = array<i64: 2, 8, 768>}, {transform_indices = @transform_1, window_bounds = array<i64: 2, 8, 768>}, {pipeline_mode = #tpu.pipeline_mode<synchronous>, transform_indices = @transform_2, window_bounds = array<i64: 768, 128>}, {pipeline_mode = #tpu.pipeline_mode<synchronous>, transform_indices = @transform_3, window_bounds = array<i64: 1, 128>}, {transform_indices = @transform_4, window_bounds = array<i64: 2, 128>}]} {
    %c0_i32 = arith.constant 0 : i32
    %0 = arith.cmpi eq, %arg1, %c0_i32 : i32
    %1 = arith.extui %0 : i1 to i32
    %c0_i32_0 = arith.constant 0 : i32
    %2 = arith.cmpi ne, %1, %c0_i32_0 : i32
    scf.if %2 {
      %cst_12 = arith.constant 0.000000e+00 : f32
      %13 = vector.broadcast %cst_12 : f32 to vector<2x768xf32>
      %c0_13 = arith.constant 0 : index
      %c0_14 = arith.constant 0 : index
      %14 = vector.load %arg7[%c0_13, %c0_14] : memref<2x768xf32, #tpu.memory_space<vmem>>, vector<2x768xf32>
      tpu.vector_store %arg7[%c0_13, %c0_14], %13 {strides = array<i32>} : memref<2x768xf32, #tpu.memory_space<vmem>>, vector<2x768xf32>,
    } else {
    }
    %c0 = arith.constant 0 : index
    %c0_1 = arith.constant 0 : index
    %c0_2 = arith.constant 0 : index
    %3 = vector.load %arg2[%c0, %c0_1, %c0_2] : memref<2x8x768xf32, #tpu.memory_space<vmem>>, vector<2x8x768xf32>
    %c0_3 = arith.constant 0 : index
    %c0_4 = arith.constant 0 : index
    %c0_5 = arith.constant 0 : index
    %4 = vector.load %arg3[%c0_3, %c0_4, %c0_5] : memref<2x8x768xf32, #tpu.memory_space<vmem>>, vector<2x8x768xf32>
    %5 = arith.addf %3, %4 : vector<2x8x768xf32>
    %c0_6 = arith.constant 0 : index
    %c0_7 = arith.constant 0 : index
    %6 = vector.load %arg7[%c0_6, %c0_7] : memref<2x768xf32, #tpu.memory_space<vmem>>, vector<2x768xf32>
    %cst = arith.constant dense<0.000000e+00> : vector<2x768xf32>
    %7 = vector.multi_reduction <add>, %5, %cst [1] : vector<2x8x768xf32> to vector<2x768xf32>
    %8 = arith.addf %6, %7 : vector<2x768xf32>
    %c0_8 = arith.constant 0 : index
    %c0_9 = arith.constant 0 : index
    %9 = vector.load %arg7[%c0_8, %c0_9] : memref<2x768xf32, #tpu.memory_space<vmem>>, vector<2x768xf32>
    tpu.vector_store %arg7[%c0_8, %c0_9], %8 {strides = array<i32>} : memref<2x768xf32, #tpu.memory_space<vmem>>, vector<2x768xf32>,
    %c0_i32_10 = arith.constant 0 : i32
    %10 = arith.cmpi eq, %arg1, %c0_i32_10 : i32
    %11 = arith.extui %10 : i1 to i32
    %c0_i32_11 = arith.constant 0 : i32
    %12 = arith.cmpi ne, %11, %c0_i32_11 : i32
    scf.if %12 {
      %c0_12 = arith.constant 0 : index
      %c0_13 = arith.constant 0 : index
      %13 = vector.load %arg7[%c0_12, %c0_13] : memref<2x768xf32, #tpu.memory_space<vmem>>, vector<2x768xf32>
      %cst_14 = arith.constant 6.250000e-02 : f32
      %14 = vector.broadcast %cst_14 : f32 to vector<2x768xf32>
      %15 = arith.mulf %13, %14 : vector<2x768xf32>
      %c0_15 = arith.constant 0 : index
      %c0_16 = arith.constant 0 : index
      %16 = vector.load %arg4[%c0_15, %c0_16] : memref<768x128xf32, #tpu.memory_space<vmem>>, vector<768x128xf32>
      %cst_17 = arith.constant dense<0.000000e+00> : vector<2x128xf32>
      %17 = tpu.matmul %15, %16, %cst_17 {dimension_numbers = #tpu.dot_dimension_numbers<[1], [0], [0], [1], [0, 0, 1, 1], [], []>} : vector<2x768xf32>, vector<768x128xf32>, vector<2x128xf32> -> vector<2x128xf32>
      %c0_18 = arith.constant 0 : index
      %c0_19 = arith.constant 0 : index
      %18 = vector.load %arg5[%c0_18, %c0_19] : memref<1x128xf32, #tpu.memory_space<vmem>>, vector<1x128xf32>
      %19 = vector.broadcast %18 : vector<1x128xf32> to vector<2x128xf32>
      %20 = arith.addf %17, %19 : vector<2x128xf32>
      %21 = arith.mulf %20, %20 : vector<2x128xf32>
      %cst_20 = arith.constant dense<0.000000e+00> : vector<2xf32>
      %22 = vector.multi_reduction <add>, %21, %cst_20 [1] : vector<2x128xf32> to vector<2xf32>
      %23 = vector.shape_cast %22 : vector<2xf32> to vector<2x1xf32>
      %24 = math.sqrt %23 : vector<2x1xf32>
      %cst_21 = arith.constant 9.99999996E-13 : f32
      %25 = vector.broadcast %cst_21 : f32 to vector<2x1xf32>
      %26 = arith.maximumf %24, %25 : vector<2x1xf32>
      %27 = vector.broadcast %26 : vector<2x1xf32> to vector<2x128xf32>
      %28 = arith.divf %20, %27 : vector<2x128xf32>
      %c0_22 = arith.constant 0 : index
      %c0_23 = arith.constant 0 : index
      %29 = vector.load %arg6[%c0_22, %c0_23] : memref<2x128xf32, #tpu.memory_space<vmem>>, vector<2x128xf32>
      tpu.vector_store %arg6[%c0_22, %c0_23], %28 {strides = array<i32>} : memref<2x128xf32, #tpu.memory_space<vmem>>, vector<2x128xf32>,
    } else {
    }
    return
  }
  func.func @transform_0(%arg0: i32, %arg1: i32) -> (i32, i32, i32) {
    %c0_i32 = arith.constant 0 : i32
    %c0_i32_0 = arith.constant 0 : i32
    return %arg0, %arg1, %c0_i32 : i32, i32, i32
  }
  func.func @transform_1(%arg0: i32, %arg1: i32) -> (i32, i32, i32) {
    %c0_i32 = arith.constant 0 : i32
    %c0_i32_0 = arith.constant 0 : i32
    return %arg0, %arg1, %c0_i32 : i32, i32, i32
  }
  func.func @transform_2(%arg0: i32, %arg1: i32) -> (i32, i32) {
    %c0_i32 = arith.constant 0 : i32
    %c0_i32_0 = arith.constant 0 : i32
    %c0_i32_1 = arith.constant 0 : i32
    return %c0_i32, %c0_i32_0 : i32, i32
  }
  func.func @transform_3(%arg0: i32, %arg1: i32) -> (i32, i32) {
    %c0_i32 = arith.constant 0 : i32
    %c0_i32_0 = arith.constant 0 : i32
    %c0_i32_1 = arith.constant 0 : i32
    return %c0_i32, %c0_i32_0 : i32, i32
  }
  func.func @transform_4(%arg0: i32, %arg1: i32) -> (i32, i32) {
    %c0_i32 = arith.constant 0 : i32
    %c0_i32_0 = arith.constant 0 : i32
    return %arg0, %c0_i32 : i32, i32
  }
}

</mosaic_0001>

<llo_original>
// kernel: tpu_custom_call.1
$region0: #{tpu_custom_call.1}
  #allocation0 [shape = 'u32[]', space=smem, size = 0x4, offset = 0x4, fixed_abs, tag = 'smem constant byte address 0x4 - core index']
  #allocation1 [shape = 'u32[144,128]{1,0:T(1,128)}', space=vmem, size = 0x12000, scoped, tag = 'internal scratch']
  #allocation2 [shape = 'f32[2,768]{1,0:T(2,128)}', space=vmem, size = 0x1800, scoped, tag = 'scratch operand']
  %s0 = inlined_call_operand.hbm [shape: f32[2,8,768], index: 0, kind: input, shape index: {}]
  %s1 = inlined_call_operand.hbm [shape: f32[2,8,768], index: 1, kind: input, shape index: {}]
  %s2 = inlined_call_operand.hbm [shape: f32[768,128], index: 2, kind: input, shape index: {}]
  %s3 = inlined_call_operand.vmem [shape: f32[1,128], index: 3, kind: input, shape index: {}]
  %s4 = inlined_call_operand.hbm [shape: f32[2,128], index: 4, kind: output, shape index: {}]
  %s5 = sld [smem:[#allocation0]]
  $region46: #{tpu_custom_call.1} parent=0
    _
  %s7 = ssub.s32 1, %s5
  %s8 = scalar_select 0, %s7, %s5
  $region1: #{tpu_custom_call.1} parent=0
    #allocation3 [shape = 'u8[49152]{0}', space=vmem, size = 0xc000, scoped, tag = 'input window, operand 0, single buffered']
    #allocation4 [shape = 's32[1]{0}', space=sflag, size = 0x4, scoped, tag = 'scoped memory for tpu_custom_call.1']
    #allocation5 [shape = 's32[1]{0}', space=sflag, size = 0x4, scoped, tag = 'scoped memory for tpu_custom_call.1']
    #allocation6 [shape = 'u8[49152]{0}', space=vmem, size = 0xc000, scoped, tag = 'input window, operand 1, single buffered']
    #allocation7 [shape = 's32[1]{0}', space=sflag, size = 0x4, scoped, tag = 'scoped memory for tpu_custom_call.1']
    #allocation8 [shape = 'u8[393216]{0}', space=vmem, size = 0x60000, scoped, tag = 'input window, operand 2, single buffered']
    #allocation9 [shape = 'u8[1024]{0}', space=vmem, size = 0x400, scoped, tag = 'output window, operand 0, single buffered']
    %9 = vsyncpa [#allocation4], 0
    %10 = vsyncpa [#allocation7], 0
    %11 = vsyncpa [#allocation5], 0
    // Predicated region
    $region2: #{tpu_custom_call.1} parent=1 // pred_check
      _
    $region3: #{tpu_custom_call.1} parent=1 // pred_check_branch
      %13 = sbr.rel (0) target = $region5
    $region4: #{tpu_custom_call.1} parent=1 // pred_region
      %s15 = ssub.s32 1536, 1536
      %16 = vsyncadd [#allocation4], %s15
      %s17 = sshll.u32 [#allocation3], 4
      %s18 = int_to_ptr.vmem [resolvable:$true] %s17
      %23 = dma.hbm_to_vmem [thread:$0]  %s0, 1536, %s18, [#allocation4], 768, 768, 48
    $region5: #{tpu_custom_call.1} parent=1 // pred_fallthru
      _
    // Predicated region
    $region6: #{tpu_custom_call.1} parent=1 // pred_check
      _
    $region7: #{tpu_custom_call.1} parent=1 // pred_check_branch
      %25 = sbr.rel (0) target = $region9
    $region8: #{tpu_custom_call.1} parent=1 // pred_region
      %s27 = ssub.s32 1536, 1536
      %28 = vsyncadd [#allocation7], %s27
      %s29 = sshll.u32 [#allocation6], 4
      %s30 = int_to_ptr.vmem [resolvable:$true] %s29
      %35 = dma.hbm_to_vmem [thread:$0]  %s1, 1536, %s30, [#allocation7], 768, 768, 48
    $region9: #{tpu_custom_call.1} parent=1 // pred_fallthru
      _
    // Predicated region
    $region10: #{tpu_custom_call.1} parent=1 // pred_check
      _
    $region11: #{tpu_custom_call.1} parent=1 // pred_check_branch
      %37 = sbr.rel (0) target = $region13
    $region12: #{tpu_custom_call.1} parent=1 // pred_region
      %s39 = ssub.s32 12288, 12288
      %40 = vsyncadd [#allocation7], %s39
      %s41 = sshll.u32 [#allocation8], 4
      %s42 = int_to_ptr.vmem [resolvable:$true] %s41
      %47 = dma.hbm_to_vmem [thread:$0]  %s2, 12288, %s42, [#allocation7], 128, 128, 8
    $region13: #{tpu_custom_call.1} parent=1 // pred_fallthru
      _
    // Predicated region
    $region14: #{tpu_custom_call.1} parent=1 // pred_check
      _
    $region15: #{tpu_custom_call.1} parent=1 // pred_check_branch
      %49 = sbr.rel (0) target = $region17
    $region16: #{tpu_custom_call.1} parent=1 // pred_region
      _
    $region17: #{tpu_custom_call.1} parent=1 // pred_fallthru
      _
    // Predicated region
    $region18: #{tpu_custom_call.1} parent=1 // pred_check
      _
    $region19: #{tpu_custom_call.1} parent=1 // pred_check_branch
      %51 = sbr.rel (0) target = $region21
    $region20: #{tpu_custom_call.1} parent=1 // pred_region
      %52 = dma.done [#allocation4], 1536
    $region21: #{tpu_custom_call.1} parent=1 // pred_fallthru
      _
    // Predicated region
    $region22: #{tpu_custom_call.1} parent=1 // pred_check
      _
    $region23: #{tpu_custom_call.1} parent=1 // pred_check_branch
      %54 = sbr.rel (0) target = $region25
    $region24: #{tpu_custom_call.1} parent=1 // pred_region
      %55 = dma.done [#allocation7], 1536
    $region25: #{tpu_custom_call.1} parent=1 // pred_fallthru
      _
    // Predicated region
    $region26: #{tpu_custom_call.1} parent=1 // pred_check
      _
    $region27: #{tpu_custom_call.1} parent=1 // pred_check_branch
      %57 = sbr.rel (0) target = $region29
    $region28: #{tpu_custom_call.1} parent=1 // pred_region
      %58 = dma.done [#allocation7], 12288
    $region29: #{tpu_custom_call.1} parent=1 // pred_fallthru
      _
    %p59 = scmp.eq.s32.totalorder 0, 0
    // Predicated region
    $region30: #{tpu_custom_call.1} parent=1 // pred_check
      %p60 = pneg %p59
    $region31: #{tpu_custom_call.1} parent=1 // pred_check_branch
      %62 = sbr.rel (%p60) target = $region33
    $region32: #{tpu_custom_call.1} parent=1 // pred_region
      %63 = vst [vmem:[#allocation2] sm:$0xff] 0.0
      %64 = vst [vmem:[#allocation2 + $0x8] sm:$0xf] 0.0
    $region33: #{tpu_custom_call.1} parent=1 // pred_fallthru
      _
    %v65 = vld [vmem:[#allocation3] sm:$0xff]
    %v66 = vld [vmem:[#allocation3 + $0x8] sm:$0xff]
    %v67 = vld [vmem:[#allocation3 + $0x10] sm:$0xff]
    %v68 = vld [vmem:[#allocation3 + $0x18] sm:$0xff]
    %v69 = vld [vmem:[#allocation3 + $0x20] sm:$0xff]
    %v70 = vld [vmem:[#allocation3 + $0x28] sm:$0xff]
    %v71 = vld [vmem:[#allocation3 + $0x30] sm:$0xff]
    %v72 = vld [vmem:[#allocation3 + $0x38] sm:$0xff]
    %v73 = vld [vmem:[#allocation3 + $0x40] sm:$0xff]
    %v74 = vld [vmem:[#allocation3 + $0x48] sm:$0xff]
    %v75 = vld [vmem:[#allocation3 + $0x50] sm:$0xff]
    %v76 = vld [vmem:[#allocation3 + $0x58] sm:$0xff]
    %v77 = vld [vmem:[#allocation6] sm:$0xff]
    %v78 = vld [vmem:[#allocation6 + $0x8] sm:$0xff]
    %v79 = vld [vmem:[#allocation6 + $0x10] sm:$0xff]
    %v80 = vld [vmem:[#allocation6 + $0x18] sm:$0xff]
    %v81 = vld [vmem:[#allocation6 + $0x20] sm:$0xff]
    %v82 = vld [vmem:[#allocation6 + $0x28] sm:$0xff]
    %v83 = vld [vmem:[#allocation6 + $0x30] sm:$0xff]
    %v84 = vld [vmem:[#allocation6 + $0x38] sm:$0xff]
    %v85 = vld [vmem:[#allocation6 + $0x40] sm:$0xff]
    %v86 = vld [vmem:[#allocation6 + $0x48] sm:$0xff]
    %v87 = vld [vmem:[#allocation6 + $0x50] sm:$0xff]
    %v88 = vld [vmem:[#allocation6 + $0x58] sm:$0xff]
    %v89 = vadd.f32 %v65, %v77
    %v90 = vadd.f32 %v66, %v78
    %v91 = vadd.f32 %v67, %v79
    %v92 = vadd.f32 %v68, %v80
    %v93 = vadd.f32 %v69, %v81
    %v94 = vadd.f32 %v70, %v82
    %v95 = vadd.f32 %v71, %v83
    %v96 = vadd.f32 %v72, %v84
    %v97 = vadd.f32 %v73, %v85
    %v98 = vadd.f32 %v74, %v86
    %v99 = vadd.f32 %v75, %v87
    %v100 = vadd.f32 %v76, %v88
    %v101 = vld [vmem:[#allocation2] sm:$0xff]
    %v102 = vld [vmem:[#allocation2 + $0x8] sm:$0xf]
    %v103 = vrot.slane %v89, 4
    %v104 = vadd.f32 %v89, %v103
    %v105 = vrot.slane %v104, 2
    %v106 = vadd.f32 %v104, %v105
    %v107 = vrot.slane %v106, 1
    %v108 = vadd.f32 %v106, %v107
    %v109 = vrot.slane %v90, 4
    %v110 = vadd.f32 %v90, %v109
    %v111 = vrot.slane %v110, 2
    %v112 = vadd.f32 %v110, %v111
    %v113 = vrot.slane %v112, 1
    %v114 = vadd.f32 %v112, %v113
    %v115 = vrot.slane %v91, 4
    %v116 = vadd.f32 %v91, %v115
    %v117 = vrot.slane %v116, 2
    %v118 = vadd.f32 %v116, %v117
    %v119 = vrot.slane %v118, 1
    %v120 = vadd.f32 %v118, %v119
    %v121 = vrot.slane %v92, 4
    %v122 = vadd.f32 %v92, %v121
    %v123 = vrot.slane %v122, 2
    %v124 = vadd.f32 %v122, %v123
    %v125 = vrot.slane %v124, 1
    %v126 = vadd.f32 %v124, %v125
    %v127 = vrot.slane %v93, 4
    %v128 = vadd.f32 %v93, %v127
    %v129 = vrot.slane %v128, 2
    %v130 = vadd.f32 %v128, %v129
    %v131 = vrot.slane %v130, 1
    %v132 = vadd.f32 %v130, %v131
    %v133 = vrot.slane %v94, 4
    %v134 = vadd.f32 %v94, %v133
    %v135 = vrot.slane %v134, 2
    %v136 = vadd.f32 %v134, %v135
    %v137 = vrot.slane %v136, 1
    %v138 = vadd.f32 %v136, %v137
    %v139 = vrot.slane %v95, 4
    %v140 = vadd.f32 %v95, %v139
    %v141 = vrot.slane %v140, 2
    %v142 = vadd.f32 %v140, %v141
    %v143 = vrot.slane %v142, 1
    %v144 = vadd.f32 %v142, %v143
    %v145 = vrot.slane %v96, 4
    %v146 = vadd.f32 %v96, %v145
    %v147 = vrot.slane %v146, 2
    %v148 = vadd.f32 %v146, %v147
    %v149 = vrot.slane %v148, 1
    %v150 = vadd.f32 %v148, %v149
    %v151 = vrot.slane %v97, 4
    %v152 = vadd.f32 %v97, %v151
    %v153 = vrot.slane %v152, 2
    %v154 = vadd.f32 %v152, %v153
    %v155 = vrot.slane %v154, 1
    %v156 = vadd.f32 %v154, %v155
    %v157 = vrot.slane %v98, 4
    %v158 = vadd.f32 %v98, %v157
    %v159 = vrot.slane %v158, 2
    %v160 = vadd.f32 %v158, %v159
    %v161 = vrot.slane %v160, 1
    %v162 = vadd.f32 %v160, %v161
    %v163 = vrot.slane %v99, 4
    %v164 = vadd.f32 %v99, %v163
    %v165 = vrot.slane %v164, 2
    %v166 = vadd.f32 %v164, %v165
    %v167 = vrot.slane %v166, 1
    %v168 = vadd.f32 %v166, %v167
    %v169 = vrot.slane %v100, 4
    %v170 = vadd.f32 %v100, %v169
    %v171 = vrot.slane %v170, 2
    %v172 = vadd.f32 %v170, %v171
    %v173 = vrot.slane %v172, 1
    %v174 = vadd.f32 %v172, %v173
    %v187 = vcombine.low %v108, %v114
    %v188 = vcombine.low %v120, %v126
    %v190 = vunpack.c.l.s4 1983009808
    %v191 = vunpack.c.0.s8 %v190
    %v192 = vlaneseq
    %v193 = vshrl.u32 %v192, 7
    %v194 = vsub.s32 %v191, %v193
    %v195 = vrot.slane %v187, %v194
    %v197 = vunpack.c.l.s4 1983009808
    %v198 = vunpack.c.0.s8 %v197
    %v199 = vlaneseq
    %v200 = vshrl.u32 %v199, 7
    %v201 = vsub.s32 %v198, %v200
    %v202 = vrot.slane %v188, %v201
    %v203 = vcombine.low %v195, %v202
    %v204 = vcombine.low %v132, %v138
    %v206 = vunpack.c.l.s4 1983009808
    %v207 = vunpack.c.0.s8 %v206
    %v208 = vlaneseq
    %v209 = vshrl.u32 %v208, 7
    %v210 = vsub.s32 %v207, %v209
    %v211 = vrot.slane %v204, %v210
    %v212 = vcombine.low %v144, %v150
    %v213 = vcombine.low %v156, %v162
    %v215 = vunpack.c.l.s4 1983009808
    %v216 = vunpack.c.0.s8 %v215
    %v217 = vlaneseq
    %v218 = vshrl.u32 %v217, 7
    %v219 = vsub.s32 %v216, %v218
    %v220 = vrot.slane %v212, %v219
    %v222 = vunpack.c.l.s4 1983009808
    %v223 = vunpack.c.0.s8 %v222
    %v224 = vlaneseq
    %v225 = vshrl.u32 %v224, 7
    %v226 = vsub.s32 %v223, %v225
    %v227 = vrot.slane %v213, %v226
    %v228 = vcombine.low %v220, %v227
    %v229 = vcombine.low %v168, %v174
    %v231 = vunpack.c.l.s4 1983009808
    %v232 = vunpack.c.0.s8 %v231
    %v233 = vlaneseq
    %v234 = vshrl.u32 %v233, 7
    %v235 = vsub.s32 %v232, %v234
    %v236 = vrot.slane %v229, %v235
    %vm237 = vcmask 1044484
    %v238 = vsel %vm237, %v203, %v203
    %vm239 = vcmask 1046534
    %v240 = vsel %vm239, %v203, %v238
    %v241 = vrot.slane %v228, 7
    %vm242 = vcmask 1041409
    %v243 = vsel %vm242, %v241, %v240
    %vm244 = vcmask 1043459
    %v245 = vsel %vm244, %v241, %v243
    %vm246 = vcmask 1045509
    %v247 = vsel %vm246, %v241, %v245
    %vm248 = vcmask 1047559
    %v249 = vsel %vm248, %v241, %v247
    %v250 = vsel %vm237, %v211, %v211
    %v251 = vsel %vm239, %v211, %v250
    %v252 = vrot.slane %v236, 7
    %v253 = vsel %vm242, %v252, %v251
    %v254 = vsel %vm244, %v252, %v253
    %v255 = vsel %vm246, %v252, %v254
    %v256 = vsel %vm248, %v252, %v255
    %v259 = vadd.f32 %v101, %v249
    %v260 = vadd.f32 %v102, %v256
    %261 = vst [vmem:[#allocation2] sm:$0xff] %v259
    %262 = vst [vmem:[#allocation2 + $0x8] sm:$0xf] %v260
    // Predicated region
    $region34: #{tpu_custom_call.1} parent=1 // pred_check
      %p263 = pneg %p59
    $region35: #{tpu_custom_call.1} parent=1 // pred_check_branch
      %265 = sbr.rel (%p263) target = $region37
    $region36: #{tpu_custom_call.1} parent=1 // pred_region
      %v266 = vld [vmem:[#allocation2] sm:$0xff]
      %v267 = vld [vmem:[#allocation2 + $0x8] sm:$0xf]
      %v268 = vmul.f32 %v266, 0.0625
      %v269 = vmul.f32 %v267, 0.0625
      %v270 = vld [vmem:[#allocation8] sm:$0xff]
      %v271 = vld [vmem:[#allocation8 + $0x8] sm:$0xff]
      %v272 = vld [vmem:[#allocation8 + $0x10] sm:$0xff]
      %v273 = vld [vmem:[#allocation8 + $0x18] sm:$0xff]
      %v274 = vld [vmem:[#allocation8 + $0x20] sm:$0xff]
      %v275 = vld [vmem:[#allocation8 + $0x28] sm:$0xff]
      %v276 = vld [vmem:[#allocation8 + $0x30] sm:$0xff]
      %v277 = vld [vmem:[#allocation8 + $0x38] sm:$0xff]
      %v278 = vld [vmem:[#allocation8 + $0x40] sm:$0xff]
      %v279 = vld [vmem:[#allocation8 + $0x48] sm:$0xff]
      %v280 = vld [vmem:[#allocation8 + $0x50] sm:$0xff]
      %v281 = vld [vmem:[#allocation8 + $0x58] sm:$0xff]
      %v282 = vld [vmem:[#allocation8 + $0x60] sm:$0xff]
      %v283 = vld [vmem:[#allocation8 + $0x68] sm:$0xff]
      %v284 = vld [vmem:[#allocation8 + $0x70] sm:$0xff]
      %v285 = vld [vmem:[#allocation8 + $0x78] sm:$0xff]
      %v286 = vld [vmem:[#allocation8 + $0x80] sm:$0xff]
      %v287 = vld [vmem:[#allocation8 + $0x88] sm:$0xff]
      %v288 = vld [vmem:[#allocation8 + $0x90] sm:$0xff]
      %v289 = vld [vmem:[#allocation8 + $0x98] sm:$0xff]
      %v290 = vld [vmem:[#allocation8 + $0xa0] sm:$0xff]
      %v291 = vld [vmem:[#allocation8 + $0xa8] sm:$0xff]
      %v292 = vld [vmem:[#allocation8 + $0xb0] sm:$0xff]
      %v293 = vld [vmem:[#allocation8 + $0xb8] sm:$0xff]
      %v294 = vld [vmem:[#allocation8 + $0xc0] sm:$0xff]
      %v295 = vld [vmem:[#allocation8 + $0xc8] sm:$0xff]
      %v296 = vld [vmem:[#allocation8 + $0xd0] sm:$0xff]
      %v297 = vld [vmem:[#allocation8 + $0xd8] sm:$0xff]
      %v298 = vld [vmem:[#allocation8 + $0xe0] sm:$0xff]
      %v299 = vld [vmem:[#allocation8 + $0xe8] sm:$0xff]
      %v300 = vld [vmem:[#allocation8 + $0xf0] sm:$0xff]
      %v301 = vld [vmem:[#allocation8 + $0xf8] sm:$0xff]
      %v302 = vld [vmem:[#allocation8 + $0x100] sm:$0xff]
      %v303 = vld [vmem:[#allocation8 + $0x108] sm:$0xff]
      %v304 = vld [vmem:[#allocation8 + $0x110] sm:$0xff]
      %v305 = vld [vmem:[#allocation8 + $0x118] sm:$0xff]
      %v306 = vld [vmem:[#allocation8 + $0x120] sm:$0xff]
      %v307 = vld [vmem:[#allocation8 + $0x128] sm:$0xff]
      %v308 = vld [vmem:[#allocation8 + $0x130] sm:$0xff]
      %v309 = vld [vmem:[#allocation8 + $0x138] sm:$0xff]
      %v310 = vld [vmem:[#allocation8 + $0x140] sm:$0xff]
      %v311 = vld [vmem:[#allocation8 + $0x148] sm:$0xff]
      %v312 = vld [vmem:[#allocation8 + $0x150] sm:$0xff]
      %v313 = vld [vmem:[#allocation8 + $0x158] sm:$0xff]
      %v314 = vld [vmem:[#allocation8 + $0x160] sm:$0xff]
      %v315 = vld [vmem:[#allocation8 + $0x168] sm:$0xff]
      %v316 = vld [vmem:[#allocation8 + $0x170] sm:$0xff]
      %v317 = vld [vmem:[#allocation8 + $0x178] sm:$0xff]
      %v318 = vld [vmem:[#allocation8 + $0x180] sm:$0xff]
      %v319 = vld [vmem:[#allocation8 + $0x188] sm:$0xff]
      %v320 = vld [vmem:[#allocation8 + $0x190] sm:$0xff]
      %v321 = vld [vmem:[#allocation8 + $0x198] sm:$0xff]
      %v322 = vld [vmem:[#allocation8 + $0x1a0] sm:$0xff]
      %v323 = vld [vmem:[#allocation8 + $0x1a8] sm:$0xff]
      %v324 = vld [vmem:[#allocation8 + $0x1b0] sm:$0xff]
      %v325 = vld [vmem:[#allocation8 + $0x1b8] sm:$0xff]
      %v326 = vld [vmem:[#allocation8 + $0x1c0] sm:$0xff]
      %v327 = vld [vmem:[#allocation8 + $0x1c8] sm:$0xff]
      %v328 = vld [vmem:[#allocation8 + $0x1d0] sm:$0xff]
      %v329 = vld [vmem:[#allocation8 + $0x1d8] sm:$0xff]
      %v330 = vld [vmem:[#allocation8 + $0x1e0] sm:$0xff]
      %v331 = vld [vmem:[#allocation8 + $0x1e8] sm:$0xff]
      %v332 = vld [vmem:[#allocation8 + $0x1f0] sm:$0xff]
      %v333 = vld [vmem:[#allocation8 + $0x1f8] sm:$0xff]
      %v334 = vld [vmem:[#allocation8 + $0x200] sm:$0xff]
      %v335 = vld [vmem:[#allocation8 + $0x208] sm:$0xff]
      %v336 = vld [vmem:[#allocation8 + $0x210] sm:$0xff]
      %v337 = vld [vmem:[#allocation8 + $0x218] sm:$0xff]
      %v338 = vld [vmem:[#allocation8 + $0x220] sm:$0xff]
      %v339 = vld [vmem:[#allocation8 + $0x228] sm:$0xff]
      %v340 = vld [vmem:[#allocation8 + $0x230] sm:$0xff]
      %v341 = vld [vmem:[#allocation8 + $0x238] sm:$0xff]
      %v342 = vld [vmem:[#allocation8 + $0x240] sm:$0xff]
      %v343 = vld [vmem:[#allocation8 + $0x248] sm:$0xff]
      %v344 = vld [vmem:[#allocation8 + $0x250] sm:$0xff]
      %v345 = vld [vmem:[#allocation8 + $0x258] sm:$0xff]
      %v346 = vld [vmem:[#allocation8 + $0x260] sm:$0xff]
      %v347 = vld [vmem:[#allocation8 + $0x268] sm:$0xff]
      %v348 = vld [vmem:[#allocation8 + $0x270] sm:$0xff]
      %v349 = vld [vmem:[#allocation8 + $0x278] sm:$0xff]
      %v350 = vld [vmem:[#allocation8 + $0x280] sm:$0xff]
      %v351 = vld [vmem:[#allocation8 + $0x288] sm:$0xff]
      %v352 = vld [vmem:[#allocation8 + $0x290] sm:$0xff]
      %v353 = vld [vmem:[#allocation8 + $0x298] sm:$0xff]
      %v354 = vld [vmem:[#allocation8 + $0x2a0] sm:$0xff]
      %v355 = vld [vmem:[#allocation8 + $0x2a8] sm:$0xff]
      %v356 = vld [vmem:[#allocation8 + $0x2b0] sm:$0xff]
      %v357 = vld [vmem:[#allocation8 + $0x2b8] sm:$0xff]
      %v358 = vld [vmem:[#allocation8 + $0x2c0] sm:$0xff]
      %v359 = vld [vmem:[#allocation8 + $0x2c8] sm:$0xff]
      %v360 = vld [vmem:[#allocation8 + $0x2d0] sm:$0xff]
      %v361 = vld [vmem:[#allocation8 + $0x2d8] sm:$0xff]
      %v362 = vld [vmem:[#allocation8 + $0x2e0] sm:$0xff]
      %v363 = vld [vmem:[#allocation8 + $0x2e8] sm:$0xff]
      %v364 = vld [vmem:[#allocation8 + $0x2f0] sm:$0xff]
      %v365 = vld [vmem:[#allocation8 + $0x2f8] sm:$0xff]
      %v366 = vld [vmem:[%s3] sm:$0x1]
      %v368 = vlaneseq
      %v369 = vshrl.u32 %v368, 7
      %v370 = vsub.s32 0, %v369
      %v371 = vrot.slane %v366, %v370
      %v375 = vcombine.high %v268, %v268
      %v377 = vunpack.c.l.s4 1983009808
      %v378 = vunpack.c.0.s8 %v377
      %v379 = vlaneseq
      %v380 = vshrl.u32 %v379, 7
      %v381 = vsub.s32 %v378, %v380
      %v382 = vrot.slane %v268, %v381
      %v384 = vunpack.c.l.s4 1983009808
      %v385 = vunpack.c.0.s8 %v384
      %v386 = vlaneseq
      %v387 = vshrl.u32 %v386, 7
      %v388 = vsub.s32 %v385, %v387
      %v389 = vrot.slane %v375, %v388
      %v390 = vcombine.high %v382, %v382
      %v391 = vcombine.high %v389, %v389
      %v393 = vunpack.c.l.s4 1983009808
      %v394 = vunpack.c.0.s8 %v393
      %v395 = vlaneseq
      %v396 = vshrl.u32 %v395, 7
      %v397 = vsub.s32 %v394, %v396
      %v398 = vrot.slane %v269, %v397
      %v399 = vcombine.high %v398, %v398
      %406 = vmatprep.subr.mxu0 0.0
      %407 = vmatpush1.msra.mxu0 %v270
      %408 = vmatprep.subr.mxu0 0.0
      %409 = vmatpush1.msra.mxu0 %v271
      %410 = vmatprep.subr.mxu0 0.0
      %411 = vmatpush1.msra.mxu0 %v272
      %412 = vmatprep.subr.mxu0 0.0
      %413 = vmatpush1.msra.mxu0 %v273
      %414 = vmatprep.subr.mxu0 0.0
      %415 = vmatpush1.msra.mxu0 %v274
      %416 = vmatprep.subr.mxu0 0.0
      %417 = vmatpush1.msra.mxu0 %v275
      %418 = vmatprep.subr.mxu0 0.0
      %419 = vmatpush1.msra.mxu0 %v276
      %420 = vmatprep.subr.mxu0 0.0
      %421 = vmatpush1.msra.mxu0 %v277
      %422 = vmatprep.subr.mxu0 0.0
      %423 = vmatpush1.msra.mxu0 %v278
      %424 = vmatprep.subr.mxu0 0.0
      %425 = vmatpush1.msra.mxu0 %v279
      %426 = vmatprep.subr.mxu0 0.0
      %427 = vmatpush1.msra.mxu0 %v280
      %428 = vmatprep.subr.mxu0 0.0
      %429 = vmatpush1.msra.mxu0 %v281
      %430 = vmatprep.subr.mxu0 0.0
      %431 = vmatpush1.msra.mxu0 %v282
      %432 = vmatprep.subr.mxu0 0.0
      %433 = vmatpush1.msra.mxu0 %v283
      %434 = vmatprep.subr.mxu0 0.0
      %435 = vmatpush1.msra.mxu0 %v284
      %436 = vmatprep.subr.mxu0 0.0
      %437 = vmatpush1.msra.mxu0 %v285
      %438 = vmatprep.subr.mxu0 0.0
      %439 = vmatpush1.msra.mxu0 %v286
      %440 = vmatprep.subr.mxu0 0.0
      %441 = vmatpush1.msra.mxu0 %v287
      %442 = vmatprep.subr.mxu0 0.0
      %443 = vmatpush1.msra.mxu0 %v288
      %444 = vmatprep.subr.mxu0 0.0
      %445 = vmatpush1.msra.mxu0 %v289
      %446 = vmatprep.subr.mxu0 0.0
      %447 = vmatpush1.msra.mxu0 %v290
      %448 = vmatprep.subr.mxu0 0.0
      %449 = vmatpush1.msra.mxu0 %v291
      %450 = vmatprep.subr.mxu0 0.0
      %451 = vmatpush1.msra.mxu0 %v292
      %452 = vmatprep.subr.mxu0 0.0
      %453 = vmatpush1.msra.mxu0 %v293
      %454 = vmatprep.subr.mxu0 0.0
      %455 = vmatpush1.msra.mxu0 %v294
      %456 = vmatprep.subr.mxu0 0.0
      %457 = vmatpush1.msra.mxu0 %v295
      %458 = vmatprep.subr.mxu0 0.0
      %459 = vmatpush1.msra.mxu0 %v296
      %460 = vmatprep.subr.mxu0 0.0
      %461 = vmatpush1.msra.mxu0 %v297
      %462 = vmatprep.subr.mxu0 0.0
      %463 = vmatpush1.msra.mxu0 %v298
      %464 = vmatprep.subr.mxu0 0.0
      %465 = vmatpush1.msra.mxu0 %v299
      %466 = vmatprep.subr.mxu0 0.0
      %467 = vmatpush1.msra.mxu0 %v300
      %468 = vmatprep.subr.mxu0 0.0
      %469 = vmatpush1.msra.mxu0 %v301
      %470 = vmatprep.mubr.f32.mxu0 %v390
      %471 = vmatmul.mubr.f32.gmra.mrb[0].mxu0 %v382
      %v472 = vpop.f32.mrb[0].mxu0
      %v473 = vadd.f32 %v371, %v472
      %v474 = vpop.f32.mrb[0].mxu0
      %475 = vdwg.mxu0
      %476 = vmatprep.subr.mxu0 0.0
      %477 = vmatpush1.msra.mxu0 %v302
      %478 = vmatprep.subr.mxu0 0.0
      %479 = vmatpush1.msra.mxu0 %v303
      %480 = vmatprep.subr.mxu0 0.0
      %481 = vmatpush1.msra.mxu0 %v304
      %482 = vmatprep.subr.mxu0 0.0
      %483 = vmatpush1.msra.mxu0 %v305
      %484 = vmatprep.subr.mxu0 0.0
      %485 = vmatpush1.msra.mxu0 %v306
      %486 = vmatprep.subr.mxu0 0.0
      %487 = vmatpush1.msra.mxu0 %v307
      %488 = vmatprep.subr.mxu0 0.0
      %489 = vmatpush1.msra.mxu0 %v308
      %490 = vmatprep.subr.mxu0 0.0
      %491 = vmatpush1.msra.mxu0 %v309
      %492 = vmatprep.subr.mxu0 0.0
      %493 = vmatpush1.msra.mxu0 %v310
      %494 = vmatprep.subr.mxu0 0.0
      %495 = vmatpush1.msra.mxu0 %v311
      %496 = vmatprep.subr.mxu0 0.0
      %497 = vmatpush1.msra.mxu0 %v312
      %498 = vmatprep.subr.mxu0 0.0
      %499 = vmatpush1.msra.mxu0 %v313
      %500 = vmatprep.subr.mxu0 0.0
      %501 = vmatpush1.msra.mxu0 %v314
      %502 = vmatprep.subr.mxu0 0.0
      %503 = vmatpush1.msra.mxu0 %v315
      %504 = vmatprep.subr.mxu0 0.0
      %505 = vmatpush1.msra.mxu0 %v316
      %506 = vmatprep.subr.mxu0 0.0
      %507 = vmatpush1.msra.mxu0 %v317
      %508 = vmatprep.subr.mxu0 0.0
      %509 = vmatpush1.msra.mxu0 %v318
      %510 = vmatprep.subr.mxu0 0.0
      %511 = vmatpush1.msra.mxu0 %v319
      %512 = vmatprep.subr.mxu0 0.0
      %513 = vmatpush1.msra.mxu0 %v320
      %514 = vmatprep.subr.mxu0 0.0
      %515 = vmatpush1.msra.mxu0 %v321
      %516 = vmatprep.subr.mxu0 0.0
      %517 = vmatpush1.msra.mxu0 %v322
      %518 = vmatprep.subr.mxu0 0.0
      %519 = vmatpush1.msra.mxu0 %v323
      %520 = vmatprep.subr.mxu0 0.0
      %521 = vmatpush1.msra.mxu0 %v324
      %522 = vmatprep.subr.mxu0 0.0
      %523 = vmatpush1.msra.mxu0 %v325
      %524 = vmatprep.subr.mxu0 0.0
      %525 = vmatpush1.msra.mxu0 %v326
      %526 = vmatprep.subr.mxu0 0.0
      %527 = vmatpush1.msra.mxu0 %v327
      %528 = vmatprep.subr.mxu0 0.0
      %529 = vmatpush1.msra.mxu0 %v328
      %530 = vmatprep.subr.mxu0 0.0
      %531 = vmatpush1.msra.mxu0 %v329
      %532 = vmatprep.subr.mxu0 0.0
      %533 = vmatpush1.msra.mxu0 %v330
      %534 = vmatprep.subr.mxu0 0.0
      %535 = vmatpush1.msra.mxu0 %v331
      %536 = vmatprep.subr.mxu0 0.0
      %537 = vmatpush1.msra.mxu0 %v332
      %538 = vmatprep.subr.mxu0 0.0
      %539 = vmatpush1.msra.mxu0 %v333
      %540 = vmatprep.mubr.f32.mxu0 %v391
      %541 = vmatmul.mubr.f32.gmra.mrb[0].mxu0 %v389
      %v542 = vpop.f32.mrb[0].mxu0
      %v543 = vadd.f32 %v473, %v542
      %v544 = vpop.f32.mrb[0].mxu0
      %545 = vdwg.mxu0
      %546 = vmatprep.subr.mxu0 0.0
      %547 = vmatpush1.msra.mxu0 %v334
      %548 = vmatprep.subr.mxu0 0.0
      %549 = vmatpush1.msra.mxu0 %v335
      %550 = vmatprep.subr.mxu0 0.0
      %551 = vmatpush1.msra.mxu0 %v336
      %552 = vmatprep.subr.mxu0 0.0
      %553 = vmatpush1.msra.mxu0 %v337
      %554 = vmatprep.subr.mxu0 0.0
      %555 = vmatpush1.msra.mxu0 %v338
      %556 = vmatprep.subr.mxu0 0.0
      %557 = vmatpush1.msra.mxu0 %v339
      %558 = vmatprep.subr.mxu0 0.0
      %559 = vmatpush1.msra.mxu0 %v340
      %560 = vmatprep.subr.mxu0 0.0
      %561 = vmatpush1.msra.mxu0 %v341
      %562 = vmatprep.subr.mxu0 0.0
      %563 = vmatpush1.msra.mxu0 %v342
      %564 = vmatprep.subr.mxu0 0.0
      %565 = vmatpush1.msra.mxu0 %v343
      %566 = vmatprep.subr.mxu0 0.0
      %567 = vmatpush1.msra.mxu0 %v344
      %568 = vmatprep.subr.mxu0 0.0
      %569 = vmatpush1.msra.mxu0 %v345
      %570 = vmatprep.subr.mxu0 0.0
      %571 = vmatpush1.msra.mxu0 %v346
      %572 = vmatprep.subr.mxu0 0.0
      %573 = vmatpush1.msra.mxu0 %v347
      %574 = vmatprep.subr.mxu0 0.0
      %575 = vmatpush1.msra.mxu0 %v348
      %576 = vmatprep.subr.mxu0 0.0
      %577 = vmatpush1.msra.mxu0 %v349
      %578 = vmatprep.subr.mxu0 0.0
      %579 = vmatpush1.msra.mxu0 %v350
      %580 = vmatprep.subr.mxu0 0.0
      %581 = vmatpush1.msra.mxu0 %v351
      %582 = vmatprep.subr.mxu0 0.0
      %583 = vmatpush1.msra.mxu0 %v352
      %584 = vmatprep.subr.mxu0 0.0
      %585 = vmatpush1.msra.mxu0 %v353
      %586 = vmatprep.subr.mxu0 0.0
      %587 = vmatpush1.msra.mxu0 %v354
      %588 = vmatprep.subr.mxu0 0.0
      %589 = vmatpush1.msra.mxu0 %v355
      %590 = vmatprep.subr.mxu0 0.0
      %591 = vmatpush1.msra.mxu0 %v356
      %592 = vmatprep.subr.mxu0 0.0
      %593 = vmatpush1.msra.mxu0 %v357
      %594 = vmatprep.subr.mxu0 0.0
      %595 = vmatpush1.msra.mxu0 %v358
      %596 = vmatprep.subr.mxu0 0.0
      %597 = vmatpush1.msra.mxu0 %v359
      %598 = vmatprep.subr.mxu0 0.0
      %599 = vmatpush1.msra.mxu0 %v360
      %600 = vmatprep.subr.mxu0 0.0
      %601 = vmatpush1.msra.mxu0 %v361
      %602 = vmatprep.subr.mxu0 0.0
      %603 = vmatpush1.msra.mxu0 %v362
      %604 = vmatprep.subr.mxu0 0.0
      %605 = vmatpush1.msra.mxu0 %v363
      %606 = vmatprep.subr.mxu0 0.0
      %607 = vmatpush1.msra.mxu0 %v364
      %608 = vmatprep.subr.mxu0 0.0
      %609 = vmatpush1.msra.mxu0 %v365
      %610 = vmatprep.mubr.f32.mxu0 %v399
      %611 = vmatmul.mubr.f32.gmra.mrb[0].mxu0 %v398
      %v612 = vpop.f32.mrb[0].mxu0
      %v613 = vadd.f32 %v543, %v612
      %v614 = vpop.f32.mrb[0].mxu0
      %615 = vdwg.mxu0
      %v616 = vmul.f32 %v613, %v613
      %vm617 = vcmask 1041408
      %v618 = vsel %vm617, %v616, 0.0
      %619 = vadd.xlane.f32.xlu0 %v618
      %v620 = vpop.xlane.xlu0 %619
      %v621 = vrsqrt.pop %v620
      %v622 = vmul.f32 %v620, %v621
      %vm623 = vcmp.eq.f32.partialorder %v620, inf
      %v624 = vsel %vm623, %v620, %v622
      %vm625 = vcmp.eq.f32.partialorder %v620, 0.0
      %v626 = vand.u32 %v620, 2147483648
      %v627 = vsel %vm625, %v626, %v624
      %v628 = vmax.f32 %v627, 1e-12
      %v629 = vrcp.pop %v628
      %v630 = vmul.f32 %v613, %v629
      %631 = vst [vmem:[#allocation9] sm:$0x3] %v630
    $region37: #{tpu_custom_call.1} parent=1 // pred_fallthru
      _
    // Predicated region
    $region38: #{tpu_custom_call.1} parent=1 // pred_check
      _
    $region39: #{tpu_custom_call.1} parent=1 // pred_check_branch
      %633 = sbr.rel (0) target = $region41
    $region40: #{tpu_custom_call.1} parent=1 // pred_region
      %s635 = ssub.s32 32, 32
      %636 = vsyncadd [#allocation5], %s635
      %s638 = sshll.u32 [#allocation9], 4
      %s639 = int_to_ptr.vmem [resolvable:$true] %s638
      %641 = dma.vmem_to_hbm [thread:$0]  %s639, 32, %s4, [#allocation5]
    $region41: #{tpu_custom_call.1} parent=1 // pred_fallthru
      _
    // Predicated region
    $region42: #{tpu_custom_call.1} parent=1 // pred_check
      _
    $region43: #{tpu_custom_call.1} parent=1 // pred_check_branch
      %643 = sbr.rel (0) target = $region45
    $region44: #{tpu_custom_call.1} parent=1 // pred_region
      %644 = dma.done [#allocation5], 32
    $region45: #{tpu_custom_call.1} parent=1 // pred_fallthru
      _
    %645 = vsyncpa [#allocation4], 1
    %646 = vsyncpa [#allocation7], 1
    %647 = vsyncpa [#allocation5], 1

</llo_original>
